<compile_context>
chip_gen: v5e
topology: v5e:2x2
jax: 0.10.0
libtpu: 0.0.40
codegen_flags: <defaults>
</compile_context>

<pallas_src>
import jax
import jax.numpy as jnp
from jax.experimental import pallas as pl
from jax.experimental.pallas import tpu as pltpu


def _transition_kernel(x_ref, scale_ref, shift_ref, w_ref, p_ref, o_ref):
    # x_ref      : (1, Cin, CHUNK)    CHUNK = 2*RB*W flattened input row-pairs
    # scale/shift: (Cin, 1) float32   fused BN (inference / running stats)
    # w_ref      : (Cout, Cin)        1x1 conv weight, pre-scaled by 0.25
    # p_ref      : (CHUNK, RB*W/2)    0/1 pooling matrix (2x2 window membership)
    # o_ref      : (1, Cout, RB*W/2)  flattened pooled output chunk
    x = x_ref[0]                                              # (Cin, CHUNK)

    # Fused BN + ReLU.  Always computed in f32 (safe on v5e, which has no bf16
    # VPU datapath); scale/shift broadcast along the lane (spatial) dim.
    y = jnp.maximum(x.astype(jnp.float32) * scale_ref[...] + shift_ref[...], 0.0)

    # 1x1 conv == channel-mixing matmul on the MXU.  Feed the matmul at the
    # storage dtype (bf16 fast path on v6e/v7x), accumulate in f32.
    y = y.astype(w_ref.dtype)
    z = jnp.dot(w_ref[...], y, preferred_element_type=jnp.float32)  # (Cout, CHUNK)

    # 2x2 average pool == matmul with the 0/1 pooling matrix; the 0.25 factor
    # is already folded into w_ref.  K = CHUNK (large), so MXU padding waste
    # is small compared to the old per-row-pair K=W pooling matmul.
    pooled = jnp.dot(z, p_ref[...], preferred_element_type=jnp.float32)

    o_ref[...] = pooled[None].astype(o_ref.dtype)


def _pick_row_pairs(Hp, W, Cin, Cout, itemsize, budget_bytes):
    """Largest number of row-pairs per grid step that keeps the minor block
    dims (8,128)-legal and the (double-buffered) VMEM use inside the budget."""
    Wp = W // 2
    chosen = None
    for rb in range(1, Hp + 1):
        if Hp % rb:
            continue
        full = rb == Hp
        # Non-full minor dims must be multiples of 128 (Mosaic block rule).
        if not full and ((2 * rb * W) % 128 or (rb * Wp) % 128):
            continue
        chunk = 2 * rb * W
        est = (2 * Cin * chunk * itemsize          # x block, double buffered
               + 2 * Cout * rb * Wp * itemsize     # out block, double buffered
               + chunk * rb * Wp * 4               # pooling matrix (f32, resident)
               + Cout * Cin * itemsize             # conv weight
               + 2 * Cin * 4)                      # scale / shift
        if est <= budget_bytes:
            chosen = rb                            # keep the largest that fits
    if chosen is None:
        # Fall back to one full image per step (always a legal block shape).
        # TODO(synk): for very large feature maps, add 128-aligned spatial
        # padding so sub-image chunks become legal and fit v7x's 64 MiB VMEM.
        chosen = Hp
    return chosen


def transition_layer(x_nchw, scale, shift, conv_w, *, storage_dtype=jnp.float32,
                     vmem_budget_bytes=20 * 1024 * 1024):
    """TransitionLayer forward (inference path), NCHW in / NCHW out.

    x_nchw : (N, Cin, H, W)
    scale  : (Cin,)  = gamma / sqrt(running_var + eps)
    shift  : (Cin,)  = beta - running_mean * scale
    conv_w : (Cout, Cin) or (Cout, Cin, 1, 1)   1x1 conv weight (no bias)
    """
    N, Cin, H, W = x_nchw.shape
    conv_w = conv_w.reshape(conv_w.shape[0], Cin)
    Cout = conv_w.shape[0]
    assert H % 2 == 0 and W % 2 == 0
    Hp, Wp = H // 2, W // 2

    itemsize = jnp.dtype(storage_dtype).itemsize
    rb = _pick_row_pairs(Hp, W, Cin, Cout, itemsize, vmem_budget_bytes)
    n_chunks = Hp // rb
    chunk = 2 * rb * W          # input spatial elements per grid step
    pchunk = rb * Wp            # output spatial elements per grid step

    # ---- free (contiguous) reshapes only: no HBM transpose passes ----------
    # (in a real network the activations would already live in storage_dtype;
    #  the cast here is only for the self-contained demo)
    x_flat = x_nchw.reshape(N, Cin, H * W).astype(storage_dtype)
    scale2d = scale.reshape(Cin, 1).astype(jnp.float32)
    shift2d = shift.reshape(Cin, 1).astype(jnp.float32)
    # Fold the 1/4 average-pool factor into the conv weight (exact: power of 2).
    w_eff = (conv_w.astype(jnp.float32) * 0.25).astype(storage_dtype)

    # 0/1 pooling matrix for one chunk: local flat input index -> pooled index.
    r = jnp.arange(chunk) // W                   # row inside the chunk
    c = jnp.arange(chunk) % W                    # column
    m = (r // 2) * Wp + (c // 2)                 # flattened pooled (row, col)
    pool_mat = (m[:, None] == jnp.arange(pchunk)[None, :]).astype(jnp.float32)

    out_flat = pl.pallas_call(
        _transition_kernel,
        out_shape=jax.ShapeDtypeStruct((N, Cout, Hp * Wp), storage_dtype),
        grid=(N, n_chunks),
        in_specs=[
            pl.BlockSpec((1, Cin, chunk), lambda n, s: (n, 0, s)),
            pl.BlockSpec((Cin, 1), lambda n, s: (0, 0)),
            pl.BlockSpec((Cin, 1), lambda n, s: (0, 0)),
            pl.BlockSpec((Cout, Cin), lambda n, s: (0, 0)),
            pl.BlockSpec((chunk, pchunk), lambda n, s: (0, 0)),
        ],
        out_specs=pl.BlockSpec((1, Cout, pchunk), lambda n, s: (n, 0, s)),
        compiler_params=pltpu.CompilerParams(
            # Both axes are independent -> megacore-shardable on v7x's 2 TCs.
            dimension_semantics=("parallel", "parallel"),
            vmem_limit_bytes=48 * 1024 * 1024),
    )(x_flat, scale2d, shift2d, w_eff, pool_mat)

    return out_flat.reshape(N, Cout, Hp, Wp)


def _reference(x_nchw, scale, shift, conv_w):
    """Pure-jnp NCHW reference (mirrors the PyTorch eval-mode forward)."""
    y = jnp.maximum(x_nchw * scale[None, :, None, None]
                    + shift[None, :, None, None], 0.0)
    z = jnp.einsum("nchw,oc->nohw", y, conv_w)
    n, co, h, w = z.shape
    return z.reshape(n, co, h // 2, 2, w // 2, 2).mean(axis=(3, 5))


if __name__ == "__main__":
    # Small shapes consistent with the module (Cout = Cin // 2).
    N, C_in, C_out, H, W = 2, 8, 4, 16, 16
    eps = 1e-5

    key = jax.random.PRNGKey(0)
    kx, kw = jax.random.split(key)
    x = jax.random.normal(kx, (N, C_in, H, W), dtype=jnp.float32)

    # FusedBatchNormReLU params / buffers (deterministic, as in __init__):
    bn_weight = jnp.ones((C_in,), jnp.float32)
    bn_bias = jnp.zeros((C_in,), jnp.float32)
    running_mean = jnp.zeros((C_in,), jnp.float32)
    running_var = jnp.ones((C_in,), jnp.float32)
    # NOTE: kernel implements the inference (running-stats) BN path, which is
    # the path the reference Triton kernels implement.
    scale = bn_weight / jnp.sqrt(running_var + eps)
    shift = bn_bias - running_mean * scale

    # 1x1 conv weight (Cout, Cin), deterministic.
    conv_w = 0.1 * jax.random.normal(kw, (C_out, C_in), dtype=jnp.float32)

    ref = _reference(x, scale, shift, conv_w)

    # f32 storage path: strict check against the f32 reference.
    out = jax.block_until_ready(transition_layer(x, scale, shift, conv_w))
    assert out.shape == (N, C_out, H // 2, W // 2)
    assert jnp.allclose(out, ref, atol=1e-5, rtol=1e-5), "f32 mismatch vs reference"

    # bf16 storage path (v6e/v7x fast path): f32 BN + f32 accumulation inside,
    # so only bf16 rounding of x / weights / output remains.
    out_bf16 = jax.block_until_ready(
        transition_layer(x, scale, shift, conv_w, storage_dtype=jnp.bfloat16))
    assert out_bf16.shape == (N, C_out, H // 2, W // 2)
    assert jnp.allclose(out_bf16.astype(jnp.float32), ref, atol=3e-2, rtol=3e-2), \
        "bf16 mismatch vs reference"

    print("KERNEL_OK")
</pallas_src>

<mosaic_0001>
module attributes {stable_mosaic.version = 11 : i64} {
  func.func @_transition_kernel(%arg0: i32, %arg1: i32, %arg2: memref<1x8x256xf32, #tpu.memory_space<vmem>>, %arg3: memref<8x1xf32, #tpu.memory_space<vmem>>, %arg4: memref<8x1xf32, #tpu.memory_space<vmem>>, %arg5: memref<4x8xf32, #tpu.memory_space<vmem>>, %arg6: memref<256x64xf32, #tpu.memory_space<vmem>>, %arg7: memref<1x4x64xf32, #tpu.memory_space<vmem>>) attributes {dimension_semantics = [#tpu.dimension_semantics<parallel>, #tpu.dimension_semantics<parallel>], iteration_bounds = array<i64: 2, 1>, scalar_prefetch = 0 : i64, scratch_operands = 0 : i64, tpu.core_type = #tpu.core_type<tc>, window_params = [{transform_indices = @transform_0, window_bounds = array<i64: 1, 8, 256>}, {pipeline_mode = #tpu.pipeline_mode<synchronous>, transform_indices = @transform_1, window_bounds = array<i64: 8, 1>}, {pipeline_mode = #tpu.pipeline_mode<synchronous>, transform_indices = @transform_2, window_bounds = array<i64: 8, 1>}, {pipeline_mode = #tpu.pipeline_mode<synchronous>, transform_indices = @transform_3, window_bounds = array<i64: 4, 8>}, {pipeline_mode = #tpu.pipeline_mode<synchronous>, transform_indices = @transform_4, window_bounds = array<i64: 256, 64>}, {transform_indices = @transform_5, window_bounds = array<i64: 1, 4, 64>}]} {
    %c0 = arith.constant 0 : index
    %c0_0 = arith.constant 0 : index
    %c0_1 = arith.constant 0 : index
    %0 = vector.load %arg2[%c0, %c0_0, %c0_1] : memref<1x8x256xf32, #tpu.memory_space<vmem>>, vector<1x8x256xf32>
    %1 = vector.shape_cast %0 : vector<1x8x256xf32> to vector<8x256xf32>
    %c0_2 = arith.constant 0 : index
    %c0_3 = arith.constant 0 : index
    %2 = vector.load %arg3[%c0_2, %c0_3] : memref<8x1xf32, #tpu.memory_space<vmem>>, vector<8x1xf32>
    %3 = vector.broadcast %2 : vector<8x1xf32> to vector<8x256xf32>
    %4 = arith.mulf %1, %3 : vector<8x256xf32>
    %c0_4 = arith.constant 0 : index
    %c0_5 = arith.constant 0 : index
    %5 = vector.load %arg4[%c0_4, %c0_5] : memref<8x1xf32, #tpu.memory_space<vmem>>, vector<8x1xf32>
    %6 = vector.broadcast %5 : vector<8x1xf32> to vector<8x256xf32>
    %7 = arith.addf %4, %6 : vector<8x256xf32>
    %cst = arith.constant 0.000000e+00 : f32
    %8 = vector.broadcast %cst : f32 to vector<8x256xf32>
    %9 = arith.maximumf %7, %8 : vector<8x256xf32>
    %c0_6 = arith.constant 0 : index
    %c0_7 = arith.constant 0 : index
    %10 = vector.load %arg5[%c0_6, %c0_7] : memref<4x8xf32, #tpu.memory_space<vmem>>, vector<4x8xf32>
    %cst_8 = arith.constant dense<0.000000e+00> : vector<4x256xf32>
    %11 = tpu.matmul %10, %9, %cst_8 {dimension_numbers = #tpu.dot_dimension_numbers<[1], [0], [0], [1], [0, 0, 1, 1], [], []>} : vector<4x8xf32>, vector<8x256xf32>, vector<4x256xf32> -> vector<4x256xf32>
    %c0_9 = arith.constant 0 : index
    %c0_10 = arith.constant 0 : index
    %12 = vector.load %arg6[%c0_9, %c0_10] : memref<256x64xf32, #tpu.memory_space<vmem>>, vector<256x64xf32>
    %cst_11 = arith.constant dense<0.000000e+00> : vector<4x64xf32>
    %13 = tpu.matmul %11, %12, %cst_11 {dimension_numbers = #tpu.dot_dimension_numbers<[1], [0], [0], [1], [0, 0, 1, 1], [], []>} : vector<4x256xf32>, vector<256x64xf32>, vector<4x64xf32> -> vector<4x64xf32>
    %14 = vector.shape_cast %13 : vector<4x64xf32> to vector<1x4x64xf32>
    %c0_12 = arith.constant 0 : index
    %c0_13 = arith.constant 0 : index
    %c0_14 = arith.constant 0 : index
    %15 = vector.load %arg7[%c0_12, %c0_13, %c0_14] : memref<1x4x64xf32, #tpu.memory_space<vmem>>, vector<1x4x64xf32>
    tpu.vector_store %arg7[%c0_12, %c0_13, %c0_14], %14 {strides = array<i32>} : memref<1x4x64xf32, #tpu.memory_space<vmem>>, vector<1x4x64xf32>,
    return
  }
  func.func @transform_0(%arg0: i32, %arg1: i32) -> (i32, i32, i32) {
    %c0_i32 = arith.constant 0 : i32
    %c0_i32_0 = arith.constant 0 : i32
    return %arg0, %c0_i32, %arg1 : i32, i32, i32
  }
  func.func @transform_1(%arg0: i32, %arg1: i32) -> (i32, i32) {
    %c0_i32 = arith.constant 0 : i32
    %c0_i32_0 = arith.constant 0 : i32
    %c0_i32_1 = arith.constant 0 : i32
    return %c0_i32, %c0_i32_0 : i32, i32
  }
  func.func @transform_2(%arg0: i32, %arg1: i32) -> (i32, i32) {
    %c0_i32 = arith.constant 0 : i32
    %c0_i32_0 = arith.constant 0 : i32
    %c0_i32_1 = arith.constant 0 : i32
    return %c0_i32, %c0_i32_0 : i32, i32
  }
  func.func @transform_3(%arg0: i32, %arg1: i32) -> (i32, i32) {
    %c0_i32 = arith.constant 0 : i32
    %c0_i32_0 = arith.constant 0 : i32
    %c0_i32_1 = arith.constant 0 : i32
    return %c0_i32, %c0_i32_0 : i32, i32
  }
  func.func @transform_4(%arg0: i32, %arg1: i32) -> (i32, i32) {
    %c0_i32 = arith.constant 0 : i32
    %c0_i32_0 = arith.constant 0 : i32
    %c0_i32_1 = arith.constant 0 : i32
    return %c0_i32, %c0_i32_0 : i32, i32
  }
  func.func @transform_5(%arg0: i32, %arg1: i32) -> (i32, i32, i32) {
    %c0_i32 = arith.constant 0 : i32
    %c0_i32_0 = arith.constant 0 : i32
    return %arg0, %c0_i32, %arg1 : i32, i32, i32
  }
}

</mosaic_0001>

<llo_original>
// kernel: tpu_custom_call.1
$region0: #{tpu_custom_call.1}
  #allocation0 [shape = 'u32[]', space=smem, size = 0x4, offset = 0x4, fixed_abs, tag = 'smem constant byte address 0x4 - core index']
  #allocation1 [shape = 'u32[72,128]{1,0:T(1,128)}', space=vmem, size = 0x9000, scoped, tag = 'internal scratch']
  %s0 = inlined_call_operand.vmem [shape: f32[2,8,256], index: 0, kind: input, shape index: {}]
  %s1 = inlined_call_operand.vmem [shape: f32[8,1], index: 1, kind: input, shape index: {}]
  %s2 = inlined_call_operand.vmem [shape: f32[8,1], index: 2, kind: input, shape index: {}]
  %s3 = inlined_call_operand.vmem [shape: f32[4,8], index: 3, kind: input, shape index: {}]
  %s4 = inlined_call_operand.vmem [shape: f32[256,64], index: 4, kind: input, shape index: {}]
  %s5 = inlined_call_operand.hbm [shape: f32[2,4,64], index: 5, kind: output, shape index: {}]
  %s6 = sld [smem:[#allocation0]]
  $region53: #{tpu_custom_call.1} parent=0
    _
  %s8 = ssub.s32 1, %s6
  %s9 = scalar_select 0, %s8, %s6
  $region1: #{tpu_custom_call.1} parent=0
    #allocation2 [shape = 'u8[4096]{0}', space=vmem, size = 0x1000, scoped, tag = 'output window, operand 0']
    #allocation3 [shape = 's32[2]{0}', space=sflag, size = 0x8, scoped, tag = 'scoped memory for tpu_custom_call.1']
    %10 = vsyncpa [#allocation3], 0
    %s11 = scalar_lea.sflag [#allocation3], 1
    %12 = vsyncpa %s11, 0
    loop: start=0, step=1, limit=4
    $region2: #{tpu_custom_call.1} parent=1 // loop_pre_header
      _
    $region3: #{tpu_custom_call.1} parent=1 // loop_header
      %s14 = sphi 0, %s18
      %p15 = scmp.ge.s32.totalorder %s14, 4
      %s21 = sphi 0, %s33
      %s22 = sphi 0, %s29
      %s23 = sphi 0, %s21
      %s24 = sphi 0, %s22
      %s25 = sphi 0, %s23
      %s26 = sphi 0, %s24
      %s38 = sphi 0, %s40
      %s41 = sphi 0, %s38
      %s42 = sphi 0, %s41
      %s58 = sphi 0, %s42
      %s62 = sphi 0, %s62
      %s64 = sphi 0, %s62
      %s65 = sphi 0, %s64
      %s79 = sphi 0, %s65
      %s83 = sphi 0, %s83
      %s85 = sphi 0, %s83
      %s86 = sphi 0, %s85
      %s100 = sphi 0, %s86
      %s104 = sphi 0, %s104
      %s106 = sphi 0, %s104
      %s107 = sphi 0, %s106
      %s121 = sphi 0, %s107
      %s125 = sphi 0, %s125
      %s127 = sphi 0, %s125
      %s128 = sphi 0, %s127
      %s142 = sphi 0, %s128
      %s150 = sphi 0, %s152
      %s153 = sphi 0, %s150
      %s154 = sphi 0, %s153
      %s170 = sphi 0, %s154
    $region4: #{tpu_custom_call.1} parent=1 // loop_header_branch
      %17 = sbr.rel (%p15) target = $region8
    $region5: #{tpu_custom_call.1} parent=1 // loop_body
      %s19 = ssub.s32 %s14, 1
      %s20 = ssub.s32 %s14, 2
      %s27 = sadd.s32 1, %s22
      %p28 = scmp.ge.s32.totalorder %s27, 1
      %s29 = scalar_select %p28, 0, %s27
      %s30 = sadd.s32 1, %s21
      %s31 = scalar_select %p28, %s30, %s21
      %p32 = scmp.ge.s32.totalorder %s31, 2
      %s33 = scalar_select %p32, 0, %s31
      %s34 = ssub.s32 %s21, %s33
      %s35 = ssub.s32 %s22, %s29
      %s36 = sor.u32 %s34, %s35
      %p37 = scmp.eq.s32.totalorder %s36, 0
      %s39 = sadd.s32 %s38, 1
      %s40 = scalar_select %p37, %s38, %s39
      %p43 = pneg %p37
      %p44 = scmp.eq.s32.totalorder %s14, 1
      %p45 = por %p43, %p44
      %p46 = scmp.ne.s32.totalorder %s38, %s41
      %p47 = scmp.eq.s32.totalorder %s14, 0
      %p48 = por %p46, %p47
      %p49 = scmp.ne.s32.totalorder %s38, %s41
      %p50 = scmp.eq.s32.totalorder %s19, 1
      %p51 = por %p49, %p50
      %p52 = scmp.ne.s32.totalorder %s41, %s42
      %p53 = scmp.eq.s32.totalorder %s19, 0
      %p54 = por %p52, %p53
      %p55 = scmp.ne.s32.totalorder %s41, %s42
      %p56 = scmp.eq.s32.totalorder %s20, 1
      %p57 = por %p55, %p56
      %p59 = scmp.ne.s32.totalorder %s42, %s58
      %p60 = scmp.eq.s32.totalorder %s20, 0
      %p61 = por %p59, %p60
      %s63 = sadd.s32 %s62, 1
      %p66 = scmp.eq.s32.totalorder %s14, 1
      %p67 = scmp.ne.s32.totalorder %s62, %s64
      %p68 = scmp.eq.s32.totalorder %s14, 0
      %p69 = por %p67, %p68
      %p70 = scmp.ne.s32.totalorder %s62, %s64
      %p71 = scmp.eq.s32.totalorder %s19, 1
      %p72 = por %p70, %p71
      %p73 = scmp.ne.s32.totalorder %s64, %s65
      %p74 = scmp.eq.s32.totalorder %s19, 0
      %p75 = por %p73, %p74
      %p76 = scmp.ne.s32.totalorder %s64, %s65
      %p77 = scmp.eq.s32.totalorder %s20, 1
      %p78 = por %p76, %p77
      %p80 = scmp.ne.s32.totalorder %s65, %s79
      %p81 = scmp.eq.s32.totalorder %s20, 0
      %p82 = por %p80, %p81
      %s84 = sadd.s32 %s83, 1
      %p87 = scmp.eq.s32.totalorder %s14, 1
      %p88 = scmp.ne.s32.totalorder %s83, %s85
      %p89 = scmp.eq.s32.totalorder %s14, 0
      %p90 = por %p88, %p89
      %p91 = scmp.ne.s32.totalorder %s83, %s85
      %p92 = scmp.eq.s32.totalorder %s19, 1
      %p93 = por %p91, %p92
      %p94 = scmp.ne.s32.totalorder %s85, %s86
      %p95 = scmp.eq.s32.totalorder %s19, 0
      %p96 = por %p94, %p95
      %p97 = scmp.ne.s32.totalorder %s85, %s86
      %p98 = scmp.eq.s32.totalorder %s20, 1
      %p99 = por %p97, %p98
      %p101 = scmp.ne.s32.totalorder %s86, %s100
      %p102 = scmp.eq.s32.totalorder %s20, 0
      %p103 = por %p101, %p102
      %s105 = sadd.s32 %s104, 1
      %p108 = scmp.eq.s32.totalorder %s14, 1
      %p109 = scmp.ne.s32.totalorder %s104, %s106
      %p110 = scmp.eq.s32.totalorder %s14, 0
      %p111 = por %p109, %p110
      %p112 = scmp.ne.s32.totalorder %s104, %s106
      %p113 = scmp.eq.s32.totalorder %s19, 1
      %p114 = por %p112, %p113
      %p115 = scmp.ne.s32.totalorder %s106, %s107
      %p116 = scmp.eq.s32.totalorder %s19, 0
      %p117 = por %p115, %p116
      %p118 = scmp.ne.s32.totalorder %s106, %s107
      %p119 = scmp.eq.s32.totalorder %s20, 1
      %p120 = por %p118, %p119
      %p122 = scmp.ne.s32.totalorder %s107, %s121
      %p123 = scmp.eq.s32.totalorder %s20, 0
      %p124 = por %p122, %p123
      %s126 = sadd.s32 %s125, 1
      %p129 = scmp.eq.s32.totalorder %s14, 1
      %p130 = scmp.ne.s32.totalorder %s125, %s127
      %p131 = scmp.eq.s32.totalorder %s14, 0
      %p132 = por %p130, %p131
      %p133 = scmp.ne.s32.totalorder %s125, %s127
      %p134 = scmp.eq.s32.totalorder %s19, 1
      %p135 = por %p133, %p134
      %p136 = scmp.ne.s32.totalorder %s127, %s128
      %p137 = scmp.eq.s32.totalorder %s19, 0
      %p138 = por %p136, %p137
      %p139 = scmp.ne.s32.totalorder %s127, %s128
      %p140 = scmp.eq.s32.totalorder %s20, 1
      %p141 = por %p139, %p140
      %p143 = scmp.ne.s32.totalorder %s128, %s142
      %p144 = scmp.eq.s32.totalorder %s20, 0
      %p145 = por %p143, %p144
      %s146 = ssub.s32 %s21, %s33
      %s147 = ssub.s32 %s22, %s29
      %s148 = sor.u32 %s146, %s147
      %p149 = scmp.eq.s32.totalorder %s148, 0
      %s151 = sadd.s32 %s150, 1
      %s152 = scalar_select %p149, %s150, %s151
      %p155 = pneg %p149
      %p156 = scmp.eq.s32.totalorder %s14, 1
      %p157 = por %p155, %p156
      %p158 = scmp.ne.s32.totalorder %s150, %s153
      %p159 = scmp.eq.s32.totalorder %s14, 0
      %p160 = por %p158, %p159
      %p161 = scmp.ne.s32.totalorder %s150, %s153
      %p162 = scmp.eq.s32.totalorder %s19, 1
      %p163 = por %p161, %p162
      %p164 = scmp.ne.s32.totalorder %s153, %s154
      %p165 = scmp.eq.s32.totalorder %s19, 0
      %p166 = por %p164, %p165
      %p167 = scmp.ne.s32.totalorder %s153, %s154
      %p168 = scmp.eq.s32.totalorder %s20, 1
      %p169 = por %p167, %p168
      %p171 = scmp.ne.s32.totalorder %s154, %s170
      %p172 = scmp.eq.s32.totalorder %s20, 0
      %p173 = por %p171, %p172
      %p174 = scmp.le.s32.totalorder 1, %s14
      %p175 = scmp.lt.s32.totalorder %s14, 3
      %p176 = pnand %p174, %p175
      %p177 = pneg %p176
      // Predicated region
      $region9: #{tpu_custom_call.1} parent=5 // pred_check
        _
      $region10: #{tpu_custom_call.1} parent=5 // pred_check_branch
        %179 = sbr.rel (%p176) target = $region12
      $region11: #{tpu_custom_call.1} parent=5 // pred_region
        %s180 = ssub.s32 %s14, 1
        // Predicated region
        $region13: #{tpu_custom_call.1} parent=11 // pred_check
          %p181 = pneg %p75
        $region14: #{tpu_custom_call.1} parent=11 // pred_check_branch
          %183 = sbr.rel (%p181) target = $region16
        $region15: #{tpu_custom_call.1} parent=11 // pred_region
          _
        $region16: #{tpu_custom_call.1} parent=11 // pred_fallthru
          _
        // Predicated region
        $region17: #{tpu_custom_call.1} parent=11 // pred_check
          %p184 = pneg %p96
        $region18: #{tpu_custom_call.1} parent=11 // pred_check_branch
          %186 = sbr.rel (%p184) target = $region20
        $region19: #{tpu_custom_call.1} parent=11 // pred_region
          _
        $region20: #{tpu_custom_call.1} parent=11 // pred_fallthru
          _
        // Predicated region
        $region21: #{tpu_custom_call.1} parent=11 // pred_check
          %p187 = pneg %p117
        $region22: #{tpu_custom_call.1} parent=11 // pred_check_branch
          %189 = sbr.rel (%p187) target = $region24
        $region23: #{tpu_custom_call.1} parent=11 // pred_region
          _
        $region24: #{tpu_custom_call.1} parent=11 // pred_fallthru
          _
        // Predicated region
        $region25: #{tpu_custom_call.1} parent=11 // pred_check
          %p190 = pneg %p138
        $region26: #{tpu_custom_call.1} parent=11 // pred_check_branch
          %192 = sbr.rel (%p190) target = $region28
        $region27: #{tpu_custom_call.1} parent=11 // pred_region
          _
        $region28: #{tpu_custom_call.1} parent=11 // pred_fallthru
          _
      $region12: #{tpu_custom_call.1} parent=5 // pred_fallthru
        _
      %p193 = scmp.lt.s32.totalorder %s14, 2
      // Predicated region
      $region29: #{tpu_custom_call.1} parent=5 // pred_check
        %p194 = pneg %p193
      $region30: #{tpu_custom_call.1} parent=5 // pred_check_branch
        %196 = sbr.rel (%p194) target = $region32
      $region31: #{tpu_custom_call.1} parent=5 // pred_region
        // Predicated region
        $region33: #{tpu_custom_call.1} parent=31 // pred_check
          %p197 = pneg %p48
        $region34: #{tpu_custom_call.1} parent=31 // pred_check_branch
          %199 = sbr.rel (%p197) target = $region36
        $region35: #{tpu_custom_call.1} parent=31 // pred_region
          %s200 = smul.u32 2, %s22
          %p201 = scmp.lt.s32.totalorder %s21, 1
          %s202 = scalar_select %p201, %s21, 1
          %p203 = scmp.lt.s32.totalorder %s200, 1
          %s204 = scalar_select %p203, %s200, 1
          %s205 = smul.addr %s202, 2
          %s206 = sadd.s32 %s204, %s205
          %s207 = smul.addr %s206, 8
          %s208 = scalar_lea.vmem %s0, %s207
          %s209 = smul.u32 2, %s22
        $region36: #{tpu_custom_call.1} parent=31 // pred_fallthru
          _
      $region32: #{tpu_custom_call.1} parent=5 // pred_fallthru
        _
      %p210 = scmp.le.s32.totalorder 1, %s14
      %p211 = scmp.lt.s32.totalorder %s14, 3
      %p212 = pnand %p210, %p211
      %p213 = pneg %p212
      // Predicated region
      $region37: #{tpu_custom_call.1} parent=5 // pred_check
        _
      $region38: #{tpu_custom_call.1} parent=5 // pred_check_branch
        %215 = sbr.rel (%p212) target = $region40
      $region39: #{tpu_custom_call.1} parent=5 // pred_region
        %s216 = ssub.s32 %s14, 1
        %s217 = smul.u32 2, %s24
        %p218 = scmp.lt.s32.totalorder %s23, 1
        %s219 = scalar_select %p218, %s23, 1
        %p220 = scmp.lt.s32.totalorder %s217, 1
        %s221 = scalar_select %p220, %s217, 1
        %s222 = smul.addr %s219, 2
        %s223 = sadd.s32 %s221, %s222
        %s224 = smul.addr %s223, 8
        %s225 = scalar_lea.vmem %s0, %s224
        %p226 = pneg %p54
        %p227 = pneg %p51
        %p228 = pneg %p75
        %p229 = pneg %p72
        %p230 = pneg %p96
        %p231 = pneg %p93
        %p232 = pneg %p117
        %p233 = pneg %p114
        %p234 = pneg %p138
        %p235 = pneg %p135
        %p236 = pneg %p166
        %p237 = pneg %p163
        %s238 = sand.u32 %s153, 1
        %s239 = scalar_lea.sflag [#allocation3], %s238
        %s240 = sand.u32 %s153, 1
        %s241 = smul.addr %s240, 4
        %s242 = scalar_lea.vmem [#allocation2], %s241
        %s243 = smul.u32 2, %s24
        %p244 = scmp.lt.s32.totalorder %s23, 1
        %s245 = scalar_select %p244, %s23, 1
        %p246 = scmp.lt.s32.totalorder %s243, 1
        %s247 = scalar_select %p246, %s243, 1
        %s248 = smul.addr %s245, 2
        %s249 = sadd.s32 %s247, %s248
        %s250 = smul.addr %s249, 8
        %s251 = scalar_lea.vmem %s0, %s250
        %s252 = smul.u32 2, %s24
        %v253 = vld [vmem:[%s251] sm:$0xff]
        %v254 = vld [vmem:[%s251 + $0x8] sm:$0xff]
        %v255 = vld [vmem:[%s1] sm:$0xff]
        %257 = vset.pattern.permute.xlu0 0
        %258 = vperm.xlu0 %257, %v255
        %v259 = vpop.permute.xlu0 %258
        %v261 = vmul.f32 %v253, %v259
        %v262 = vmul.f32 %v254, %v259
        %v263 = vld [vmem:[%s2] sm:$0xff]
        %265 = vset.pattern.permute.xlu0 0
        %266 = vperm.xlu0 %265, %v263
        %v267 = vpop.permute.xlu0 %266
        %v269 = vadd.f32 %v261, %v267
        %v270 = vadd.f32 %v262, %v267
        %v271 = vmax.f32 %v269, 0.0
        %v272 = vmax.f32 %v270, 0.0
        %v273 = vld [vmem:[%s3] sm:$0xf]
        %vm274 = vcmask 64512
        %v276 = vsel %vm274, %v273, 0
        %278 = vmatpush.msra.mxu0 0.0
        %279 = vmatpush.msra.mxu0 0.0
        %280 = vmatpush.msra.mxu0 0.0
        %281 = vmatpush.msra.mxu0 0.0
        %282 = vmatpush.msra.mxu0 0.0
        %283 = vmatpush.msra.mxu0 0.0
        %284 = vmatpush.msra.mxu0 0.0
        %285 = vmatpush.msra.mxu0 0.0
        %286 = vmatpush.msra.mxu0 0.0
        %287 = vmatpush.msra.mxu0 0.0
        %288 = vmatpush.msra.mxu0 0.0
        %289 = vmatpush.msra.mxu0 0.0
        %290 = vmatpush.msra.mxu0 0.0
        %291 = vmatpush.msra.mxu0 0.0
        %292 = vmatpush.msra.mxu0 0.0
        %293 = vmatpush.msra.mxu0 %v271
        %294 = vmatmul.f32.gmra.mxu0 %v276
        %v295 = vpop.f32.mrf.mxu0
        %v296 = vadd.f32 0.0, %v295
        %297 = vdwg.mxu0
        %298 = vmatpush.msra.mxu0 0.0
        %299 = vmatpush.msra.mxu0 0.0
        %300 = vmatpush.msra.mxu0 0.0
        %301 = vmatpush.msra.mxu0 0.0
        %302 = vmatpush.msra.mxu0 0.0
        %303 = vmatpush.msra.mxu0 0.0
        %304 = vmatpush.msra.mxu0 0.0
        %305 = vmatpush.msra.mxu0 0.0
        %306 = vmatpush.msra.mxu0 0.0
        %307 = vmatpush.msra.mxu0 0.0
        %308 = vmatpush.msra.mxu0 0.0
        %309 = vmatpush.msra.mxu0 0.0
        %310 = vmatpush.msra.mxu0 0.0
        %311 = vmatpush.msra.mxu0 0.0
        %312 = vmatpush.msra.mxu0 0.0
        %313 = vmatpush.msra.mxu0 %v272
        %314 = vmatmul.f32.gmra.mxu0 %v276
        %v315 = vpop.f32.mrf.mxu0
        %v316 = vadd.f32 0.0, %v315
        %317 = vdwg.mxu0
        %v318 = vld [vmem:[%s4] sm:$0xff]
        %v319 = vld [vmem:[%s4 + $0x8] sm:$0xff]
        %v320 = vld [vmem:[%s4 + $0x10] sm:$0xff]
        %v321 = vld [vmem:[%s4 + $0x18] sm:$0xff]
        %v322 = vld [vmem:[%s4 + $0x20] sm:$0xff]
        %v323 = vld [vmem:[%s4 + $0x28] sm:$0xff]
        %v324 = vld [vmem:[%s4 + $0x30] sm:$0xff]
        %v325 = vld [vmem:[%s4 + $0x38] sm:$0xff]
        %v326 = vld [vmem:[%s4 + $0x40] sm:$0xff]
        %v327 = vld [vmem:[%s4 + $0x48] sm:$0xff]
        %v328 = vld [vmem:[%s4 + $0x50] sm:$0xff]
        %v329 = vld [vmem:[%s4 + $0x58] sm:$0xff]
        %v330 = vld [vmem:[%s4 + $0x60] sm:$0xff]
        %v331 = vld [vmem:[%s4 + $0x68] sm:$0xff]
        %v332 = vld [vmem:[%s4 + $0x70] sm:$0xff]
        %v333 = vld [vmem:[%s4 + $0x78] sm:$0xff]
        %v334 = vld [vmem:[%s4 + $0x80] sm:$0xff]
        %v335 = vld [vmem:[%s4 + $0x88] sm:$0xff]
        %v336 = vld [vmem:[%s4 + $0x90] sm:$0xff]
        %v337 = vld [vmem:[%s4 + $0x98] sm:$0xff]
        %v338 = vld [vmem:[%s4 + $0xa0] sm:$0xff]
        %v339 = vld [vmem:[%s4 + $0xa8] sm:$0xff]
        %v340 = vld [vmem:[%s4 + $0xb0] sm:$0xff]
        %v341 = vld [vmem:[%s4 + $0xb8] sm:$0xff]
        %v342 = vld [vmem:[%s4 + $0xc0] sm:$0xff]
        %v343 = vld [vmem:[%s4 + $0xc8] sm:$0xff]
        %v344 = vld [vmem:[%s4 + $0xd0] sm:$0xff]
        %v345 = vld [vmem:[%s4 + $0xd8] sm:$0xff]
        %v346 = vld [vmem:[%s4 + $0xe0] sm:$0xff]
        %v347 = vld [vmem:[%s4 + $0xe8] sm:$0xff]
        %v348 = vld [vmem:[%s4 + $0xf0] sm:$0xff]
        %v349 = vld [vmem:[%s4 + $0xf8] sm:$0xff]
        %350 = vmatpush.msra.mxu0 %v333
        %351 = vmatpush.msra.mxu0 %v332
        %352 = vmatpush.msra.mxu0 %v331
        %353 = vmatpush.msra.mxu0 %v330
        %354 = vmatpush.msra.mxu0 %v329
        %355 = vmatpush.msra.mxu0 %v328
        %356 = vmatpush.msra.mxu0 %v327
        %357 = vmatpush.msra.mxu0 %v326
        %358 = vmatpush.msra.mxu0 %v325
        %359 = vmatpush.msra.mxu0 %v324
        %360 = vmatpush.msra.mxu0 %v323
        %361 = vmatpush.msra.mxu0 %v322
        %362 = vmatpush.msra.mxu0 %v321
        %363 = vmatpush.msra.mxu0 %v320
        %364 = vmatpush.msra.mxu0 %v319
        %365 = vmatpush.msra.mxu0 %v318
        %366 = vmatmul.f32.gmra.mxu0 %v296
        %v367 = vpop.f32.mrf.mxu0
        %v368 = vadd.f32 0.0, %v367
        %369 = vdwg.mxu0
        %370 = vmatpush.msra.mxu0 %v349
        %371 = vmatpush.msra.mxu0 %v348
        %372 = vmatpush.msra.mxu0 %v347
        %373 = vmatpush.msra.mxu0 %v346
        %374 = vmatpush.msra.mxu0 %v345
        %375 = vmatpush.msra.mxu0 %v344
        %376 = vmatpush.msra.mxu0 %v343
        %377 = vmatpush.msra.mxu0 %v342
        %378 = vmatpush.msra.mxu0 %v341
        %379 = vmatpush.msra.mxu0 %v340
        %380 = vmatpush.msra.mxu0 %v339
        %381 = vmatpush.msra.mxu0 %v338
        %382 = vmatpush.msra.mxu0 %v337
        %383 = vmatpush.msra.mxu0 %v336
        %384 = vmatpush.msra.mxu0 %v335
        %385 = vmatpush.msra.mxu0 %v334
        %386 = vmatmul.f32.gmra.mxu0 %v316
        %v387 = vpop.f32.mrf.mxu0
        %v388 = vadd.f32 %v368, %v387
        %389 = vdwg.mxu0
        %vm390 = vcmask 519168
        %391 = vst.msk [vmem:[%s242] sm:$0xf] %vm390, %v388
        %s392 = sand.u32 %s153, 1
        %s393 = scalar_lea.sflag [#allocation3], %s392
        %s394 = sand.u32 %s153, 1
        %s395 = smul.addr %s394, 4
        %s396 = scalar_lea.vmem [#allocation2], %s395
        // Predicated region
        $region41: #{tpu_custom_call.1} parent=39 // pred_check
          %p397 = pneg %p163
        $region42: #{tpu_custom_call.1} parent=39 // pred_check_branch
          %399 = sbr.rel (%p397) target = $region44
        $region43: #{tpu_custom_call.1} parent=39 // pred_region
          %401 = vsyncadd %s393, 0
          %s402 = sadd.s32 %s24, %s23
          %s403 = smul.addr %s402, 4
          %s404 = scalar_lea.hbm %s5, %s403
          %s406 = sshll.u32 %s396, 4
          %s407 = int_to_ptr.vmem [resolvable:$true] %s406
          %s408 = sshll.u32 %s404, 4
          %s409 = int_to_ptr.hbm [resolvable:$true] %s408
          %411 = dma.vmem_to_hbm [thread:$0]  %s407, 64, %s409, %s393
        $region44: #{tpu_custom_call.1} parent=39 // pred_fallthru
          _
      $region40: #{tpu_custom_call.1} parent=5 // pred_fallthru
        _
      %p412 = scmp.le.s32.totalorder 2, %s14
      // Predicated region
      $region45: #{tpu_custom_call.1} parent=5 // pred_check
        %p413 = pneg %p412
      $region46: #{tpu_custom_call.1} parent=5 // pred_check_branch
        %415 = sbr.rel (%p413) target = $region48
      $region47: #{tpu_custom_call.1} parent=5 // pred_region
        %s416 = ssub.s32 %s14, 2
        // Predicated region
        $region49: #{tpu_custom_call.1} parent=47 // pred_check
          %p417 = pneg %p169
        $region50: #{tpu_custom_call.1} parent=47 // pred_check_branch
          %419 = sbr.rel (%p417) target = $region52
        $region51: #{tpu_custom_call.1} parent=47 // pred_region
          %s420 = sand.u32 %s154, 1
          %s421 = scalar_lea.sflag [#allocation3], %s420
          %s422 = sand.u32 %s154, 1
          %s423 = smul.addr %s422, 4
          %s424 = scalar_lea.vmem [#allocation2], %s423
          %426 = dma.done %s421, 64
        $region52: #{tpu_custom_call.1} parent=47 // pred_fallthru
          _
      $region48: #{tpu_custom_call.1} parent=5 // pred_fallthru
        _
    $region6: #{tpu_custom_call.1} parent=1 // loop_footer
      %s18 = sadd.s32 1, %s14
    $region7: #{tpu_custom_call.1} parent=1 // loop_footer_branch
      %13 = sbr.rel target = $region3
    $region8: #{tpu_custom_call.1} parent=1 // loop_exit
      _
    %427 = vsyncpa [#allocation3], 1
    %s428 = scalar_lea.sflag [#allocation3], 1
    %429 = vsyncpa %s428, 1

</llo_original>
